<compile_context>
chip_gen: v6e
topology: v6e:2x2x1
jax: 0.10.0
libtpu: 0.0.40
codegen_flags: <defaults>
</compile_context>

<pallas_src>
import functools

import jax
import jax.numpy as jnp
from jax import lax
from jax.experimental import pallas as pl
from jax.experimental.pallas import tpu as pltpu

LANES = 128
SUBLANES = 8
ROW_BLOCK_ELEMS = SUBLANES * LANES  # 1024 elements = one (8, 128) vreg tile
TM_MAX = 2048                       # rows per grid step (2048x128 f32 = 1 MiB/buffer)
NCORES = 2                          # parallel core axis (v7x megacore; no-op on 1-TC chips)


def _soft_dice_kernel(x_ref, y_ref, out_ref, *, tm, steps, rows_valid, exact):
    c = pl.program_id(0)   # core (parallel) axis
    i = pl.program_id(1)   # reduction (arbitrary) axis

    @pl.when(i == 0)
    def _init():
        out_ref[...] = jnp.zeros_like(out_ref)

    def fold(v):
        # (tm, 128) -> (8, 128) lane-parallel partial sums.  The reshape keeps
        # each (8, 128) vreg tile intact, so this lowers to pure VPU adds.
        return v.reshape(tm // SUBLANES, SUBLANES, LANES).sum(axis=0)

    def accumulate(xv, yv):
        xv = xv.astype(jnp.float32)
        yv = yv.astype(jnp.float32)
        out_ref[0] += fold(xv * yv)   # partials of sum(x * y)
        out_ref[1] += fold(xv * xv)   # partials of sum(x ** 2)
        out_ref[2] += fold(yv * yv)   # partials of sum(y ** 2)

    if exact:
        # Grid tiles the array exactly: no masking anywhere (hot path).
        accumulate(x_ref[...], y_ref[...])
    else:
        # Logical row-block handled by this grid point.  On the last core this
        # may run past the real block count; the index_map clamps the DMA and
        # the row mask below zeroes the contribution (nothing double counted).
        t = c * steps + i
        rows_left = rows_valid - t * tm          # valid rows in this tile
        is_full = rows_left >= tm

        @pl.when(is_full)
        def _full():
            accumulate(x_ref[...], y_ref[...])

        @pl.when(jnp.logical_not(is_full))
        def _boundary():
            valid = lax.broadcasted_iota(jnp.int32, (tm, LANES), 0) < rows_left
            accumulate(jnp.where(valid, x_ref[...], 0),
                       jnp.where(valid, y_ref[...], 0))


def soft_dice_loss(x: jax.Array, y: jax.Array, epsilon: float = 1e-6) -> jax.Array:
    assert x.shape == y.shape, "x and y must have the same shape"
    n = x.size

    # Flatten in native dtype (free for contiguous arrays; the f32 cast happens
    # on the VMEM tile inside the kernel).
    xf = x.reshape(-1)
    yf = y.reshape(-1)

    # Only pad (a copy) if the flat size is not a multiple of 8*128.  Typical
    # NCHW tensors need no copy at all.
    n_pad = pl.cdiv(n, ROW_BLOCK_ELEMS) * ROW_BLOCK_ELEMS
    if n_pad != n:
        xf = jnp.pad(xf, (0, n_pad - n))
        yf = jnp.pad(yf, (0, n_pad - n))

    rows = n_pad // LANES               # multiple of 8
    x2d = xf.reshape(rows, LANES)
    y2d = yf.reshape(rows, LANES)

    tm = min(TM_MAX, rows)              # both multiples of 8
    nblocks = pl.cdiv(rows, tm)         # real row-block count
    steps = pl.cdiv(nblocks, NCORES)    # blocks per core
    exact = (rows % tm == 0) and (NCORES * steps == nblocks)

    def in_map(c, i):
        t = c * steps + i
        if exact:
            return (t, 0)
        # Clamp so every DMA starts in-bounds; excess tiles are masked in-kernel.
        return (jnp.minimum(t, nblocks - 1), 0)

    kernel = functools.partial(
        _soft_dice_kernel, tm=tm, steps=steps, rows_valid=rows, exact=exact
    )

    # Advisory cost hint for the XLA scheduler (mem-bound streaming reduce).
    cost = pl.CostEstimate(
        flops=6 * n_pad,
        transcendentals=0,
        bytes_accessed=2 * n_pad * x2d.dtype.itemsize
        + NCORES * 3 * SUBLANES * LANES * 4,
    )

    partials = pl.pallas_call(
        kernel,
        out_shape=jax.ShapeDtypeStruct((NCORES, 3, SUBLANES, LANES), jnp.float32),
        grid=(NCORES, steps),
        in_specs=[
            pl.BlockSpec((tm, LANES), in_map),
            pl.BlockSpec((tm, LANES), in_map),
        ],
        # Per-core resident accumulator block (revisited across the i axis).
        out_specs=pl.BlockSpec((None, 3, SUBLANES, LANES), lambda c, i: (c, 0, 0, 0)),
        compiler_params=pltpu.CompilerParams(
            dimension_semantics=("parallel", "arbitrary"),
        ),
        cost_estimate=cost,
    )(x2d, y2d)

    # Tiny final combine in plain JAX (also threads the caller's epsilon).
    sums = jnp.sum(partials, axis=(0, 2, 3))   # [sum(x*y), sum(x*x), sum(y*y)]
    intersection = 2.0 * sums[0]
    union = sums[1] + sums[2]
    return 1.0 - intersection / (union + epsilon)


def soft_dice_loss_ref(x, y, epsilon=1e-6):
    x = x.astype(jnp.float32)
    y = y.astype(jnp.float32)
    intersection = 2.0 * jnp.sum(x * y)
    union = jnp.sum(x * x) + jnp.sum(y * y)
    return 1.0 - intersection / (union + epsilon)


if __name__ == "__main__":
    key = jax.random.PRNGKey(0)
    kx, ky = jax.random.split(key)
    # NCHW inputs, as the PyTorch module would receive (sigmoid outputs vs masks).
    x = jax.nn.sigmoid(jax.random.normal(kx, (2, 4, 16, 16), dtype=jnp.float32))
    y = (jax.random.uniform(ky, (2, 4, 16, 16)) > 0.5).astype(jnp.float32)

    loss = jax.block_until_ready(soft_dice_loss(x, y))
    ref = jax.block_until_ready(soft_dice_loss_ref(x, y))

    assert jnp.allclose(loss, ref, atol=1e-5, rtol=1e-5), (loss, ref)
    print("KERNEL_OK")
</pallas_src>

<mosaic_0001>
module attributes {stable_mosaic.version = 11 : i64} {
  func.func @_soft_dice_kernel(%arg0: i32, %arg1: i32, %arg2: memref<16x128xf32, #tpu.memory_space<vmem>>, %arg3: memref<16x128xf32, #tpu.memory_space<vmem>>, %arg4: memref<1x3x8x128xf32, #tpu.memory_space<vmem>>) attributes {dimension_semantics = [#tpu.dimension_semantics<parallel>, #tpu.dimension_semantics<arbitrary>], iteration_bounds = array<i64: 2, 1>, scalar_prefetch = 0 : i64, scratch_operands = 0 : i64, tpu.core_type = #tpu.core_type<tc>, window_params = [{transform_indices = @transform_0, window_bounds = array<i64: 16, 128>}, {transform_indices = @transform_1, window_bounds = array<i64: 16, 128>}, {transform_indices = @transform_2, window_bounds = array<i64: 1, 3, 8, 128>}]} {
    %c0_i32 = arith.constant 0 : i32
    %0 = arith.cmpi eq, %arg1, %c0_i32 : i32
    %1 = arith.extui %0 : i1 to i32
    %c0_i32_0 = arith.constant 0 : i32
    %2 = arith.cmpi ne, %1, %c0_i32_0 : i32
    scf.if %2 {
      %cst = arith.constant 0.000000e+00 : f32
      %13 = vector.broadcast %cst : f32 to vector<3x8x128xf32>
      %c0 = arith.constant 0 : index
      %c0_5 = arith.constant 0 : index
      %c0_6 = arith.constant 0 : index
      %c0_7 = arith.constant 0 : index
      %14 = vector.load %arg4[%c0, %c0_5, %c0_6, %c0_7] : memref<1x3x8x128xf32, #tpu.memory_space<vmem>>, vector<1x3x8x128xf32>
      %15 = vector.shape_cast %14 : vector<1x3x8x128xf32> to vector<3x8x128xf32>
      %16 = vector.shape_cast %13 : vector<3x8x128xf32> to vector<1x3x8x128xf32>
      tpu.vector_store %arg4[%c0, %c0_5, %c0_6, %c0_7], %16 {strides = array<i32>} : memref<1x3x8x128xf32, #tpu.memory_space<vmem>>, vector<1x3x8x128xf32>,
    } else {
    }
    %c1_i32 = arith.constant 1 : i32
    %3 = arith.muli %arg0, %c1_i32 : i32
    %4 = arith.addi %3, %arg1 : i32
    %c16_i32 = arith.constant 16 : i32
    %5 = arith.muli %4, %c16_i32 : i32
    %c16_i32_1 = arith.constant 16 : i32
    %6 = arith.subi %c16_i32_1, %5 : i32
    %c16_i32_2 = arith.constant 16 : i32
    %7 = arith.cmpi sge, %6, %c16_i32_2 : i32
    %8 = arith.extui %7 : i1 to i32
    %c0_i32_3 = arith.constant 0 : i32
    %9 = arith.cmpi ne, %8, %c0_i32_3 : i32
    scf.if %9 {
      %c0 = arith.constant 0 : index
      %c0_5 = arith.constant 0 : index
      %13 = vector.load %arg2[%c0, %c0_5] : memref<16x128xf32, #tpu.memory_space<vmem>>, vector<16x128xf32>
      %c0_6 = arith.constant 0 : index
      %c0_7 = arith.constant 0 : index
      %14 = vector.load %arg3[%c0_6, %c0_7] : memref<16x128xf32, #tpu.memory_space<vmem>>, vector<16x128xf32>
      %c0_8 = arith.constant 0 : index
      %c0_9 = arith.constant 0 : index
      %c0_10 = arith.constant 0 : index
      %c0_11 = arith.constant 0 : index
      %15 = vector.load %arg4[%c0_8, %c0_9, %c0_10, %c0_11] : memref<1x3x8x128xf32, #tpu.memory_space<vmem>>, vector<1x1x8x128xf32>
      %16 = vector.shape_cast %15 : vector<1x1x8x128xf32> to vector<8x128xf32>
      %17 = arith.mulf %13, %14 : vector<16x128xf32>
      %18 = vector.shape_cast %17 : vector<16x128xf32> to vector<2x8x128xf32>
      %cst = arith.constant dense<0.000000e+00> : vector<8x128xf32>
      %19 = vector.multi_reduction <add>, %18, %cst [0] : vector<2x8x128xf32> to vector<8x128xf32>
      %20 = arith.addf %16, %19 : vector<8x128xf32>
      %c0_12 = arith.constant 0 : index
      %c0_13 = arith.constant 0 : index
      %c0_14 = arith.constant 0 : index
      %c0_15 = arith.constant 0 : index
      %21 = vector.load %arg4[%c0_12, %c0_13, %c0_14, %c0_15] : memref<1x3x8x128xf32, #tpu.memory_space<vmem>>, vector<1x1x8x128xf32>
      %22 = vector.shape_cast %21 : vector<1x1x8x128xf32> to vector<8x128xf32>
      %23 = vector.shape_cast %20 : vector<8x128xf32> to vector<1x1x8x128xf32>
      tpu.vector_store %arg4[%c0_12, %c0_13, %c0_14, %c0_15], %23 {strides = array<i32>} : memref<1x3x8x128xf32, #tpu.memory_space<vmem>>, vector<1x1x8x128xf32>,
      %c0_16 = arith.constant 0 : index
      %c1 = arith.constant 1 : index
      %c0_17 = arith.constant 0 : index
      %c0_18 = arith.constant 0 : index
      %24 = vector.load %arg4[%c0_16, %c1, %c0_17, %c0_18] : memref<1x3x8x128xf32, #tpu.memory_space<vmem>>, vector<1x1x8x128xf32>
      %25 = vector.shape_cast %24 : vector<1x1x8x128xf32> to vector<8x128xf32>
      %26 = arith.mulf %13, %13 : vector<16x128xf32>
      %27 = vector.shape_cast %26 : vector<16x128xf32> to vector<2x8x128xf32>
      %cst_19 = arith.constant dense<0.000000e+00> : vector<8x128xf32>
      %28 = vector.multi_reduction <add>, %27, %cst_19 [0] : vector<2x8x128xf32> to vector<8x128xf32>
      %29 = arith.addf %25, %28 : vector<8x128xf32>
      %c0_20 = arith.constant 0 : index
      %c1_21 = arith.constant 1 : index
      %c0_22 = arith.constant 0 : index
      %c0_23 = arith.constant 0 : index
      %30 = vector.load %arg4[%c0_20, %c1_21, %c0_22, %c0_23] : memref<1x3x8x128xf32, #tpu.memory_space<vmem>>, vector<1x1x8x128xf32>
      %31 = vector.shape_cast %30 : vector<1x1x8x128xf32> to vector<8x128xf32>
      %32 = vector.shape_cast %29 : vector<8x128xf32> to vector<1x1x8x128xf32>
      tpu.vector_store %arg4[%c0_20, %c1_21, %c0_22, %c0_23], %32 {strides = array<i32>} : memref<1x3x8x128xf32, #tpu.memory_space<vmem>>, vector<1x1x8x128xf32>,
      %c0_24 = arith.constant 0 : index
      %c2 = arith.constant 2 : index
      %c0_25 = arith.constant 0 : index
      %c0_26 = arith.constant 0 : index
      %33 = vector.load %arg4[%c0_24, %c2, %c0_25, %c0_26] : memref<1x3x8x128xf32, #tpu.memory_space<vmem>>, vector<1x1x8x128xf32>
      %34 = vector.shape_cast %33 : vector<1x1x8x128xf32> to vector<8x128xf32>
      %35 = arith.mulf %14, %14 : vector<16x128xf32>
      %36 = vector.shape_cast %35 : vector<16x128xf32> to vector<2x8x128xf32>
      %cst_27 = arith.constant dense<0.000000e+00> : vector<8x128xf32>
      %37 = vector.multi_reduction <add>, %36, %cst_27 [0] : vector<2x8x128xf32> to vector<8x128xf32>
      %38 = arith.addf %34, %37 : vector<8x128xf32>
      %c0_28 = arith.constant 0 : index
      %c2_29 = arith.constant 2 : index
      %c0_30 = arith.constant 0 : index
      %c0_31 = arith.constant 0 : index
      %39 = vector.load %arg4[%c0_28, %c2_29, %c0_30, %c0_31] : memref<1x3x8x128xf32, #tpu.memory_space<vmem>>, vector<1x1x8x128xf32>
      %40 = vector.shape_cast %39 : vector<1x1x8x128xf32> to vector<8x128xf32>
      %41 = vector.shape_cast %38 : vector<8x128xf32> to vector<1x1x8x128xf32>
      tpu.vector_store %arg4[%c0_28, %c2_29, %c0_30, %c0_31], %41 {strides = array<i32>} : memref<1x3x8x128xf32, #tpu.memory_space<vmem>>, vector<1x1x8x128xf32>,
    } else {
    }
    %true = arith.constant true
    %10 = arith.xori %7, %true : i1
    %11 = arith.extui %10 : i1 to i32
    %c0_i32_4 = arith.constant 0 : i32
    %12 = arith.cmpi ne, %11, %c0_i32_4 : i32
    scf.if %12 {
      %13 = tpu.iota {dimensions = array<i32: 0>} : vector<16x128xi32>
      %14 = vector.broadcast %6 : i32 to vector<16x128xi32>
      %15 = arith.cmpi slt, %13, %14 : vector<16x128xi32>
      %c0 = arith.constant 0 : index
      %c0_5 = arith.constant 0 : index
      %16 = vector.load %arg2[%c0, %c0_5] : memref<16x128xf32, #tpu.memory_space<vmem>>, vector<16x128xf32>
      %c0_i32_6 = arith.constant 0 : i32
      %17 = arith.sitofp %c0_i32_6 : i32 to f32
      %18 = vector.broadcast %17 : f32 to vector<16x128xf32>
      %19 = arith.select %15, %16, %18 : vector<16x128xi1>, vector<16x128xf32>
      %c0_7 = arith.constant 0 : index
      %c0_8 = arith.constant 0 : index
      %20 = vector.load %arg3[%c0_7, %c0_8] : memref<16x128xf32, #tpu.memory_space<vmem>>, vector<16x128xf32>
      %c0_i32_9 = arith.constant 0 : i32
      %21 = arith.sitofp %c0_i32_9 : i32 to f32
      %22 = vector.broadcast %21 : f32 to vector<16x128xf32>
      %23 = arith.select %15, %20, %22 : vector<16x128xi1>, vector<16x128xf32>
      %c0_10 = arith.constant 0 : index
      %c0_11 = arith.constant 0 : index
      %c0_12 = arith.constant 0 : index
      %c0_13 = arith.constant 0 : index
      %24 = vector.load %arg4[%c0_10, %c0_11, %c0_12, %c0_13] : memref<1x3x8x128xf32, #tpu.memory_space<vmem>>, vector<1x1x8x128xf32>
      %25 = vector.shape_cast %24 : vector<1x1x8x128xf32> to vector<8x128xf32>
      %26 = arith.mulf %19, %23 : vector<16x128xf32>
      %27 = vector.shape_cast %26 : vector<16x128xf32> to vector<2x8x128xf32>
      %cst = arith.constant dense<0.000000e+00> : vector<8x128xf32>
      %28 = vector.multi_reduction <add>, %27, %cst [0] : vector<2x8x128xf32> to vector<8x128xf32>
      %29 = arith.addf %25, %28 : vector<8x128xf32>
      %c0_14 = arith.constant 0 : index
      %c0_15 = arith.constant 0 : index
      %c0_16 = arith.constant 0 : index
      %c0_17 = arith.constant 0 : index
      %30 = vector.load %arg4[%c0_14, %c0_15, %c0_16, %c0_17] : memref<1x3x8x128xf32, #tpu.memory_space<vmem>>, vector<1x1x8x128xf32>
      %31 = vector.shape_cast %30 : vector<1x1x8x128xf32> to vector<8x128xf32>
      %32 = vector.shape_cast %29 : vector<8x128xf32> to vector<1x1x8x128xf32>
      tpu.vector_store %arg4[%c0_14, %c0_15, %c0_16, %c0_17], %32 {strides = array<i32>} : memref<1x3x8x128xf32, #tpu.memory_space<vmem>>, vector<1x1x8x128xf32>,
      %c0_18 = arith.constant 0 : index
      %c1 = arith.constant 1 : index
      %c0_19 = arith.constant 0 : index
      %c0_20 = arith.constant 0 : index
      %33 = vector.load %arg4[%c0_18, %c1, %c0_19, %c0_20] : memref<1x3x8x128xf32, #tpu.memory_space<vmem>>, vector<1x1x8x128xf32>
      %34 = vector.shape_cast %33 : vector<1x1x8x128xf32> to vector<8x128xf32>
      %35 = arith.mulf %19, %19 : vector<16x128xf32>
      %36 = vector.shape_cast %35 : vector<16x128xf32> to vector<2x8x128xf32>
      %cst_21 = arith.constant dense<0.000000e+00> : vector<8x128xf32>
      %37 = vector.multi_reduction <add>, %36, %cst_21 [0] : vector<2x8x128xf32> to vector<8x128xf32>
      %38 = arith.addf %34, %37 : vector<8x128xf32>
      %c0_22 = arith.constant 0 : index
      %c1_23 = arith.constant 1 : index
      %c0_24 = arith.constant 0 : index
      %c0_25 = arith.constant 0 : index
      %39 = vector.load %arg4[%c0_22, %c1_23, %c0_24, %c0_25] : memref<1x3x8x128xf32, #tpu.memory_space<vmem>>, vector<1x1x8x128xf32>
      %40 = vector.shape_cast %39 : vector<1x1x8x128xf32> to vector<8x128xf32>
      %41 = vector.shape_cast %38 : vector<8x128xf32> to vector<1x1x8x128xf32>
      tpu.vector_store %arg4[%c0_22, %c1_23, %c0_24, %c0_25], %41 {strides = array<i32>} : memref<1x3x8x128xf32, #tpu.memory_space<vmem>>, vector<1x1x8x128xf32>,
      %c0_26 = arith.constant 0 : index
      %c2 = arith.constant 2 : index
      %c0_27 = arith.constant 0 : index
      %c0_28 = arith.constant 0 : index
      %42 = vector.load %arg4[%c0_26, %c2, %c0_27, %c0_28] : memref<1x3x8x128xf32, #tpu.memory_space<vmem>>, vector<1x1x8x128xf32>
      %43 = vector.shape_cast %42 : vector<1x1x8x128xf32> to vector<8x128xf32>
      %44 = arith.mulf %23, %23 : vector<16x128xf32>
      %45 = vector.shape_cast %44 : vector<16x128xf32> to vector<2x8x128xf32>
      %cst_29 = arith.constant dense<0.000000e+00> : vector<8x128xf32>
      %46 = vector.multi_reduction <add>, %45, %cst_29 [0] : vector<2x8x128xf32> to vector<8x128xf32>
      %47 = arith.addf %43, %46 : vector<8x128xf32>
      %c0_30 = arith.constant 0 : index
      %c2_31 = arith.constant 2 : index
      %c0_32 = arith.constant 0 : index
      %c0_33 = arith.constant 0 : index
      %48 = vector.load %arg4[%c0_30, %c2_31, %c0_32, %c0_33] : memref<1x3x8x128xf32, #tpu.memory_space<vmem>>, vector<1x1x8x128xf32>
      %49 = vector.shape_cast %48 : vector<1x1x8x128xf32> to vector<8x128xf32>
      %50 = vector.shape_cast %47 : vector<8x128xf32> to vector<1x1x8x128xf32>
      tpu.vector_store %arg4[%c0_30, %c2_31, %c0_32, %c0_33], %50 {strides = array<i32>} : memref<1x3x8x128xf32, #tpu.memory_space<vmem>>, vector<1x1x8x128xf32>,
    } else {
    }
    return
  }
  func.func @transform_0(%arg0: i32, %arg1: i32) -> (i32, i32) {
    %c1_i32 = arith.constant 1 : i32
    %0 = arith.muli %arg0, %c1_i32 : i32
    %1 = arith.addi %0, %arg1 : i32
    %c0_i32 = arith.constant 0 : i32
    %2 = arith.minsi %1, %c0_i32 : i32
    %c0_i32_0 = arith.constant 0 : i32
    %c0_i32_1 = arith.constant 0 : i32
    return %2, %c0_i32_0 : i32, i32
  }
  func.func @transform_1(%arg0: i32, %arg1: i32) -> (i32, i32) {
    %c1_i32 = arith.constant 1 : i32
    %0 = arith.muli %arg0, %c1_i32 : i32
    %1 = arith.addi %0, %arg1 : i32
    %c0_i32 = arith.constant 0 : i32
    %2 = arith.minsi %1, %c0_i32 : i32
    %c0_i32_0 = arith.constant 0 : i32
    %c0_i32_1 = arith.constant 0 : i32
    return %2, %c0_i32_0 : i32, i32
  }
  func.func @transform_2(%arg0: i32, %arg1: i32) -> (i32, i32, i32, i32) {
    %c0_i32 = arith.constant 0 : i32
    %c0_i32_0 = arith.constant 0 : i32
    %c0_i32_1 = arith.constant 0 : i32
    %c0_i32_2 = arith.constant 0 : i32
    return %arg0, %c0_i32, %c0_i32_0, %c0_i32_1 : i32, i32, i32, i32
  }
}

</mosaic_0001>

<llo_original>
// kernel: tpu_custom_call.1
$region0: #{tpu_custom_call.1}
  #allocation0 [shape = 'u32[]', space=smem, size = 0x4, offset = 0x4, fixed_abs, tag = 'smem constant byte address 0x4 - core index']
  #allocation1 [shape = 'u32[144,128]{1,0:T(1,128)}', space=vmem, size = 0x12000, scoped, tag = 'internal scratch']
  %s0 = inlined_call_operand.hbm [shape: f32[16,128], index: 0, kind: input, shape index: {}]
  %s1 = inlined_call_operand.hbm [shape: f32[16,128], index: 1, kind: input, shape index: {}]
  %s2 = inlined_call_operand.hbm [shape: f32[2,3,8,128], index: 2, kind: output, shape index: {}]
  %s3 = sld [smem:[#allocation0]]
  $region61: #{tpu_custom_call.1} parent=0
    _
  %s5 = ssub.s32 1, %s3
  %s6 = scalar_select 0, %s5, %s3
  $region1: #{tpu_custom_call.1} parent=0
    #allocation2 [shape = 'u8[16384]{0}', space=vmem, size = 0x4000, scoped, tag = 'input window, operand 0']
    #allocation3 [shape = 's32[2]{0}', space=sflag, size = 0x8, scoped, tag = 'scoped memory for tpu_custom_call.1']
    #allocation4 [shape = 's32[2]{0}', space=sflag, size = 0x8, scoped, tag = 'scoped memory for tpu_custom_call.1']
    #allocation5 [shape = 'u8[16384]{0}', space=vmem, size = 0x4000, scoped, tag = 'input window, operand 1']
    #allocation6 [shape = 's32[2]{0}', space=sflag, size = 0x8, scoped, tag = 'scoped memory for tpu_custom_call.1']
    #allocation7 [shape = 'u8[24576]{0}', space=vmem, size = 0x6000, scoped, tag = 'output window, operand 0']
    %7 = vsyncpa [#allocation3], 0
    %s8 = scalar_lea.sflag [#allocation3], 1
    %9 = vsyncpa %s8, 0
    %10 = vsyncpa [#allocation6], 0
    %s11 = scalar_lea.sflag [#allocation6], 1
    %12 = vsyncpa %s11, 0
    %13 = vsyncpa [#allocation4], 0
    %s14 = scalar_lea.sflag [#allocation4], 1
    %15 = vsyncpa %s14, 0
    loop: start=0, step=1, limit=4
    $region2: #{tpu_custom_call.1} parent=1 // loop_pre_header
      _
    $region3: #{tpu_custom_call.1} parent=1 // loop_header
      %s17 = sphi 0, %s21
      %p18 = scmp.ge.s32.totalorder %s17, 4
      %s24 = sphi 0, %s36
      %s25 = sphi 0, %s32
      %s26 = sphi 0, %s24
      %s27 = sphi 0, %s25
      %s28 = sphi 0, %s26
      %s29 = sphi 0, %s27
      %s45 = sphi 0, %s47
      %s48 = sphi 0, %s45
      %s49 = sphi 0, %s48
      %s65 = sphi 0, %s49
      %s77 = sphi 0, %s79
      %s80 = sphi 0, %s77
      %s81 = sphi 0, %s80
      %s97 = sphi 0, %s81
      %s103 = sphi 0, %s105
      %s106 = sphi 0, %s103
      %s107 = sphi 0, %s106
      %s123 = sphi 0, %s107
    $region4: #{tpu_custom_call.1} parent=1 // loop_header_branch
      %20 = sbr.rel (%p18) target = $region8
    $region5: #{tpu_custom_call.1} parent=1 // loop_body
      %s22 = ssub.s32 %s17, 1
      %s23 = ssub.s32 %s17, 2
      %s30 = sadd.s32 1, %s25
      %p31 = scmp.ge.s32.totalorder %s30, 1
      %s32 = scalar_select %p31, 0, %s30
      %s33 = sadd.s32 1, %s24
      %s34 = scalar_select %p31, %s33, %s24
      %p35 = scmp.ge.s32.totalorder %s34, 2
      %s36 = scalar_select %p35, 0, %s34
      %s37 = sadd.s32 %s24, %s25
      %p38 = scmp.lt.s32.totalorder %s37, 0
      %s39 = scalar_select %p38, %s37, 0
      %s40 = sadd.s32 %s36, %s32
      %p41 = scmp.lt.s32.totalorder %s40, 0
      %s42 = scalar_select %p41, %s40, 0
      %s43 = ssub.s32 %s39, %s42
      %p44 = scmp.eq.s32.totalorder %s43, 0
      %s46 = sadd.s32 %s45, 1
      %s47 = scalar_select %p44, %s45, %s46
      %p50 = pneg %p44
      %p51 = scmp.eq.s32.totalorder %s17, 1
      %p52 = por %p50, %p51
      %p53 = scmp.ne.s32.totalorder %s45, %s48
      %p54 = scmp.eq.s32.totalorder %s17, 0
      %p55 = por %p53, %p54
      %p56 = scmp.ne.s32.totalorder %s45, %s48
      %p57 = scmp.eq.s32.totalorder %s22, 1
      %p58 = por %p56, %p57
      %p59 = scmp.ne.s32.totalorder %s48, %s49
      %p60 = scmp.eq.s32.totalorder %s22, 0
      %p61 = por %p59, %p60
      %p62 = scmp.ne.s32.totalorder %s48, %s49
      %p63 = scmp.eq.s32.totalorder %s23, 1
      %p64 = por %p62, %p63
      %p66 = scmp.ne.s32.totalorder %s49, %s65
      %p67 = scmp.eq.s32.totalorder %s23, 0
      %p68 = por %p66, %p67
      %s69 = sadd.s32 %s24, %s25
      %p70 = scmp.lt.s32.totalorder %s69, 0
      %s71 = scalar_select %p70, %s69, 0
      %s72 = sadd.s32 %s36, %s32
      %p73 = scmp.lt.s32.totalorder %s72, 0
      %s74 = scalar_select %p73, %s72, 0
      %s75 = ssub.s32 %s71, %s74
      %p76 = scmp.eq.s32.totalorder %s75, 0
      %s78 = sadd.s32 %s77, 1
      %s79 = scalar_select %p76, %s77, %s78
      %p82 = pneg %p76
      %p83 = scmp.eq.s32.totalorder %s17, 1
      %p84 = por %p82, %p83
      %p85 = scmp.ne.s32.totalorder %s77, %s80
      %p86 = scmp.eq.s32.totalorder %s17, 0
      %p87 = por %p85, %p86
      %p88 = scmp.ne.s32.totalorder %s77, %s80
      %p89 = scmp.eq.s32.totalorder %s22, 1
      %p90 = por %p88, %p89
      %p91 = scmp.ne.s32.totalorder %s80, %s81
      %p92 = scmp.eq.s32.totalorder %s22, 0
      %p93 = por %p91, %p92
      %p94 = scmp.ne.s32.totalorder %s80, %s81
      %p95 = scmp.eq.s32.totalorder %s23, 1
      %p96 = por %p94, %p95
      %p98 = scmp.ne.s32.totalorder %s81, %s97
      %p99 = scmp.eq.s32.totalorder %s23, 0
      %p100 = por %p98, %p99
      %s101 = ssub.s32 %s24, %s36
      %p102 = scmp.eq.s32.totalorder %s101, 0
      %s104 = sadd.s32 %s103, 1
      %s105 = scalar_select %p102, %s103, %s104
      %p108 = pneg %p102
      %p109 = scmp.eq.s32.totalorder %s17, 1
      %p110 = por %p108, %p109
      %p111 = scmp.ne.s32.totalorder %s103, %s106
      %p112 = scmp.eq.s32.totalorder %s17, 0
      %p113 = por %p111, %p112
      %p114 = scmp.ne.s32.totalorder %s103, %s106
      %p115 = scmp.eq.s32.totalorder %s22, 1
      %p116 = por %p114, %p115
      %p117 = scmp.ne.s32.totalorder %s106, %s107
      %p118 = scmp.eq.s32.totalorder %s22, 0
      %p119 = por %p117, %p118
      %p120 = scmp.ne.s32.totalorder %s106, %s107
      %p121 = scmp.eq.s32.totalorder %s23, 1
      %p122 = por %p120, %p121
      %p124 = scmp.ne.s32.totalorder %s107, %s123
      %p125 = scmp.eq.s32.totalorder %s23, 0
      %p126 = por %p124, %p125
      %p127 = scmp.le.s32.totalorder 1, %s17
      %p128 = scmp.lt.s32.totalorder %s17, 3
      %p129 = pnand %p127, %p128
      %p130 = pneg %p129
      // Predicated region
      $region9: #{tpu_custom_call.1} parent=5 // pred_check
        _
      $region10: #{tpu_custom_call.1} parent=5 // pred_check_branch
        %132 = sbr.rel (%p129) target = $region12
      $region11: #{tpu_custom_call.1} parent=5 // pred_region
        %s133 = ssub.s32 %s17, 1
      $region12: #{tpu_custom_call.1} parent=5 // pred_fallthru
        _
      %p134 = scmp.lt.s32.totalorder %s17, 2
      // Predicated region
      $region13: #{tpu_custom_call.1} parent=5 // pred_check
        %p135 = pneg %p134
      $region14: #{tpu_custom_call.1} parent=5 // pred_check_branch
        %137 = sbr.rel (%p135) target = $region16
      $region15: #{tpu_custom_call.1} parent=5 // pred_region
        // Predicated region
        $region17: #{tpu_custom_call.1} parent=15 // pred_check
          %p138 = pneg %p55
        $region18: #{tpu_custom_call.1} parent=15 // pred_check_branch
          %140 = sbr.rel (%p138) target = $region20
        $region19: #{tpu_custom_call.1} parent=15 // pred_region
          %s141 = sand.u32 %s45, 1
          %s142 = scalar_lea.sflag [#allocation3], %s141
          %s143 = sand.u32 %s45, 1
          %s144 = smul.addr %s143, 16
          %s145 = scalar_lea.vmem [#allocation2], %s144
          %s146 = sadd.s32 %s24, %s25
          %p147 = scmp.lt.s32.totalorder %s146, 0
          %s148 = scalar_select %p147, %s146, 0
          %s149 = smul.u32 2, %s148
          %s151 = ssub.s32 256, 256
          %152 = vsyncadd %s142, %s151
          %s153 = smul.addr %s149, 128
          %s154 = scalar_lea.hbm %s0, %s153
          %s155 = sshll.u32 %s145, 4
          %s156 = int_to_ptr.vmem [resolvable:$true] %s155
          %161 = dma.hbm_to_vmem [thread:$0]  %s154, 256, %s156, %s142, 128, 128, 8
        $region20: #{tpu_custom_call.1} parent=15 // pred_fallthru
          _
        // Predicated region
        $region21: #{tpu_custom_call.1} parent=15 // pred_check
          %p162 = pneg %p87
        $region22: #{tpu_custom_call.1} parent=15 // pred_check_branch
          %164 = sbr.rel (%p162) target = $region24
        $region23: #{tpu_custom_call.1} parent=15 // pred_region
          %s165 = sand.u32 %s77, 1
          %s166 = scalar_lea.sflag [#allocation6], %s165
          %s167 = sand.u32 %s77, 1
          %s168 = smul.addr %s167, 16
          %s169 = scalar_lea.vmem [#allocation5], %s168
          %s170 = sadd.s32 %s24, %s25
          %p171 = scmp.lt.s32.totalorder %s170, 0
          %s172 = scalar_select %p171, %s170, 0
          %s173 = smul.u32 2, %s172
          %s175 = ssub.s32 256, 256
          %176 = vsyncadd %s166, %s175
          %s177 = smul.addr %s173, 128
          %s178 = scalar_lea.hbm %s1, %s177
          %s179 = sshll.u32 %s169, 4
          %s180 = int_to_ptr.vmem [resolvable:$true] %s179
          %185 = dma.hbm_to_vmem [thread:$0]  %s178, 256, %s180, %s166, 128, 128, 8
        $region24: #{tpu_custom_call.1} parent=15 // pred_fallthru
          _
      $region16: #{tpu_custom_call.1} parent=5 // pred_fallthru
        _
      %p186 = scmp.le.s32.totalorder 1, %s17
      %p187 = scmp.lt.s32.totalorder %s17, 3
      %p188 = pnand %p186, %p187
      %p189 = pneg %p188
      // Predicated region
      $region25: #{tpu_custom_call.1} parent=5 // pred_check
        _
      $region26: #{tpu_custom_call.1} parent=5 // pred_check_branch
        %191 = sbr.rel (%p188) target = $region28
      $region27: #{tpu_custom_call.1} parent=5 // pred_region
        %s192 = ssub.s32 %s17, 1
        %s193 = sand.u32 %s48, 1
        %s194 = scalar_lea.sflag [#allocation3], %s193
        %s195 = sand.u32 %s48, 1
        %s196 = smul.addr %s195, 16
        %s197 = scalar_lea.vmem [#allocation2], %s196
        // Predicated region
        $region29: #{tpu_custom_call.1} parent=27 // pred_check
          %p198 = pneg %p61
        $region30: #{tpu_custom_call.1} parent=27 // pred_check_branch
          %200 = sbr.rel (%p198) target = $region32
        $region31: #{tpu_custom_call.1} parent=27 // pred_region
          %201 = dma.done %s194, 256
        $region32: #{tpu_custom_call.1} parent=27 // pred_fallthru
          _
        %s202 = sand.u32 %s80, 1
        %s203 = scalar_lea.sflag [#allocation6], %s202
        %s204 = sand.u32 %s80, 1
        %s205 = smul.addr %s204, 16
        %s206 = scalar_lea.vmem [#allocation5], %s205
        // Predicated region
        $region33: #{tpu_custom_call.1} parent=27 // pred_check
          %p207 = pneg %p93
        $region34: #{tpu_custom_call.1} parent=27 // pred_check_branch
          %209 = sbr.rel (%p207) target = $region36
        $region35: #{tpu_custom_call.1} parent=27 // pred_region
          %210 = dma.done %s203, 256
        $region36: #{tpu_custom_call.1} parent=27 // pred_fallthru
          _
        %s211 = sand.u32 %s48, 1
        %s212 = scalar_lea.sflag [#allocation3], %s211
        %s213 = sand.u32 %s48, 1
        %s214 = smul.addr %s213, 16
        %s215 = scalar_lea.vmem [#allocation2], %s214
        %p216 = pneg %p61
        %p217 = pneg %p58
        %s218 = sand.u32 %s80, 1
        %s219 = scalar_lea.sflag [#allocation6], %s218
        %s220 = sand.u32 %s80, 1
        %s221 = smul.addr %s220, 16
        %s222 = scalar_lea.vmem [#allocation5], %s221
        %p223 = pneg %p93
        %p224 = pneg %p90
        %p225 = pneg %p119
        %p226 = pneg %p116
        %s227 = sand.u32 %s106, 1
        %s228 = scalar_lea.sflag [#allocation4], %s227
        %s229 = sand.u32 %s106, 1
        %s230 = smul.addr %s229, 24
        %s231 = scalar_lea.vmem [#allocation7], %s230
        %s232 = sadd.s32 %s26, %s27
        %p233 = scmp.lt.s32.totalorder %s232, 0
        %s234 = scalar_select %p233, %s232, 0
        %s235 = smul.u32 2, %s234
        %s236 = sadd.s32 %s26, %s27
        %p237 = scmp.lt.s32.totalorder %s236, 0
        %s238 = scalar_select %p237, %s236, 0
        %s239 = smul.u32 2, %s238
        %p240 = scmp.eq.s32.totalorder %s27, 0
        // Predicated region
        $region37: #{tpu_custom_call.1} parent=27 // pred_check
          %p241 = pneg %p240
        $region38: #{tpu_custom_call.1} parent=27 // pred_check_branch
          %243 = sbr.rel (%p241) target = $region40
        $region39: #{tpu_custom_call.1} parent=27 // pred_region
          %244 = vst [vmem:[%s231] sm:$0xff] 0.0
          %245 = vst [vmem:[%s231 + $0x8] sm:$0xff] 0.0
          %246 = vst [vmem:[%s231 + $0x10] sm:$0xff] 0.0
        $region40: #{tpu_custom_call.1} parent=27 // pred_fallthru
          _
        %s247 = sadd.s32 %s26, %s27
        %s248 = smul.u32 %s247, 16
        %s249 = ssub.s32 16, %s248
        %p250 = scmp.ge.s32.totalorder %s249, 16
        // Predicated region
        $region41: #{tpu_custom_call.1} parent=27 // pred_check
          %p251 = pneg %p250
        $region42: #{tpu_custom_call.1} parent=27 // pred_check_branch
          %253 = sbr.rel (%p251) target = $region44
        $region43: #{tpu_custom_call.1} parent=27 // pred_region
          %v254 = vld [vmem:[%s197] sm:$0xff]
          %v255 = vld [vmem:[%s197 + $0x8] sm:$0xff]
          %v256 = vld [vmem:[%s206] sm:$0xff]
          %v257 = vld [vmem:[%s206 + $0x8] sm:$0xff]
          %v258 = vld [vmem:[%s231] sm:$0xff]
          %v259 = vmul.f32 %v254, %v256
          %v260 = vmul.f32 %v255, %v257
          %v261 = vadd.f32 %v259, %v260
          %v262 = vadd.f32 %v258, %v261
          %263 = vst [vmem:[%s231] sm:$0xff] %v262
          %s264 = scalar_lea.vmem %s231, 8 [#allocation7]
          %v265 = vld [vmem:[%s264] sm:$0xff]
          %v266 = vmul.f32 %v254, %v254
          %v267 = vmul.f32 %v255, %v255
          %v268 = vadd.f32 %v266, %v267
          %v269 = vadd.f32 %v265, %v268
          %270 = vst [vmem:[%s264] sm:$0xff] %v269
          %s271 = scalar_lea.vmem %s231, 16 [#allocation7]
          %v272 = vld [vmem:[%s271] sm:$0xff]
          %v273 = vmul.f32 %v256, %v256
          %v274 = vmul.f32 %v257, %v257
          %v275 = vadd.f32 %v273, %v274
          %v276 = vadd.f32 %v272, %v275
          %277 = vst [vmem:[%s271] sm:$0xff] %v276
        $region44: #{tpu_custom_call.1} parent=27 // pred_fallthru
          _
        %p278 = scmp.lt.s32.totalorder %s249, 16
        // Predicated region
        $region45: #{tpu_custom_call.1} parent=27 // pred_check
          %p279 = pneg %p278
        $region46: #{tpu_custom_call.1} parent=27 // pred_check_branch
          %281 = sbr.rel (%p279) target = $region48
        $region47: #{tpu_custom_call.1} parent=27 // pred_region
          %v282 = vlaneseq
          %v283 = vshrl.u32 %v282, 7
          %v284 = vadd.s32 %v283, 8
          %v285 = vstv %s249
          %vm286 = vcmp.lt.s32.totalorder %v283, %v285
          %vm287 = vcmp.lt.s32.totalorder %v284, %v285
          %v288 = vld [vmem:[%s197] sm:$0xff]
          %v289 = vld [vmem:[%s197 + $0x8] sm:$0xff]
          %v290 = vsel %vm286, %v288, 0.0
          %v291 = vsel %vm287, %v289, 0.0
          %v292 = vld [vmem:[%s206] sm:$0xff]
          %v293 = vld [vmem:[%s206 + $0x8] sm:$0xff]
          %v294 = vsel %vm286, %v292, 0.0
          %v295 = vsel %vm287, %v293, 0.0
          %v296 = vld [vmem:[%s231] sm:$0xff]
          %v297 = vmul.f32 %v290, %v294
          %v298 = vmul.f32 %v291, %v295
          %v299 = vadd.f32 %v297, %v298
          %v300 = vadd.f32 %v296, %v299
          %301 = vst [vmem:[%s231] sm:$0xff] %v300
          %s302 = scalar_lea.vmem %s231, 8 [#allocation7]
          %v303 = vld [vmem:[%s302] sm:$0xff]
          %v304 = vmul.f32 %v290, %v290
          %v305 = vmul.f32 %v291, %v291
          %v306 = vadd.f32 %v304, %v305
          %v307 = vadd.f32 %v303, %v306
          %308 = vst [vmem:[%s302] sm:$0xff] %v307
          %s309 = scalar_lea.vmem %s231, 16 [#allocation7]
          %v310 = vld [vmem:[%s309] sm:$0xff]
          %v311 = vmul.f32 %v294, %v294
          %v312 = vmul.f32 %v295, %v295
          %v313 = vadd.f32 %v311, %v312
          %v314 = vadd.f32 %v310, %v313
          %315 = vst [vmem:[%s309] sm:$0xff] %v314
        $region48: #{tpu_custom_call.1} parent=27 // pred_fallthru
          _
        %s316 = sand.u32 %s106, 1
        %s317 = scalar_lea.sflag [#allocation4], %s316
        %s318 = sand.u32 %s106, 1
        %s319 = smul.addr %s318, 24
        %s320 = scalar_lea.vmem [#allocation7], %s319
        // Predicated region
        $region49: #{tpu_custom_call.1} parent=27 // pred_check
          %p321 = pneg %p116
        $region50: #{tpu_custom_call.1} parent=27 // pred_check_branch
          %323 = sbr.rel (%p321) target = $region52
        $region51: #{tpu_custom_call.1} parent=27 // pred_region
          %s325 = ssub.s32 384, 384
          %326 = vsyncadd %s317, %s325
          %s327 = smul.addr %s26, 3
          %s328 = smul.addr %s327, 128
          %s329 = scalar_lea.hbm %s2, %s328
          %s330 = sshll.u32 %s320, 4
          %s331 = int_to_ptr.vmem [resolvable:$true] %s330
          %336 = dma.vmem_to_hbm [thread:$0]  %s331, 384, %s329, %s317, 128, 128, 8
        $region52: #{tpu_custom_call.1} parent=27 // pred_fallthru
          _
      $region28: #{tpu_custom_call.1} parent=5 // pred_fallthru
        _
      %p337 = scmp.le.s32.totalorder 2, %s17
      // Predicated region
      $region53: #{tpu_custom_call.1} parent=5 // pred_check
        %p338 = pneg %p337
      $region54: #{tpu_custom_call.1} parent=5 // pred_check_branch
        %340 = sbr.rel (%p338) target = $region56
      $region55: #{tpu_custom_call.1} parent=5 // pred_region
        %s341 = ssub.s32 %s17, 2
        // Predicated region
        $region57: #{tpu_custom_call.1} parent=55 // pred_check
          %p342 = pneg %p122
        $region58: #{tpu_custom_call.1} parent=55 // pred_check_branch
          %344 = sbr.rel (%p342) target = $region60
        $region59: #{tpu_custom_call.1} parent=55 // pred_region
          %s345 = sand.u32 %s107, 1
          %s346 = scalar_lea.sflag [#allocation4], %s345
          %s347 = sand.u32 %s107, 1
          %s348 = smul.addr %s347, 24
          %s349 = scalar_lea.vmem [#allocation7], %s348
          %350 = dma.done %s346, 384
        $region60: #{tpu_custom_call.1} parent=55 // pred_fallthru
          _
      $region56: #{tpu_custom_call.1} parent=5 // pred_fallthru
        _
    $region6: #{tpu_custom_call.1} parent=1 // loop_footer
      %s21 = sadd.s32 1, %s17
    $region7: #{tpu_custom_call.1} parent=1 // loop_footer_branch
      %16 = sbr.rel target = $region3
    $region8: #{tpu_custom_call.1} parent=1 // loop_exit
      _
    %351 = vsyncpa [#allocation3], 1
    %s352 = scalar_lea.sflag [#allocation3], 1
    %353 = vsyncpa %s352, 1
    %354 = vsyncpa [#allocation6], 1
    %s355 = scalar_lea.sflag [#allocation6], 1
    %356 = vsyncpa %s355, 1
    %357 = vsyncpa [#allocation4], 1
    %s358 = scalar_lea.sflag [#allocation4], 1
    %359 = vsyncpa %s358, 1

</llo_original>
